<compile_context>
chip_gen: v7x
topology: tpu7x:2x2x1
jax: 0.10.0
libtpu: 0.0.40
codegen_flags: <defaults>
</compile_context>

<pallas_src>
import functools

import jax
import jax.numpy as jnp
from jax import lax
from jax.experimental import pallas as pl
from jax.experimental.pallas import tpu as pltpu


_BIG = 1e30  # sentinel |s|^2 for padded source columns; never wins the min.


def _round_up(x, m):
    return ((x + m - 1) // m) * m


# ---------------------------------------------------------------------------
# Kernel: per grid step (b, ti) compute
#     sum_{valid i in target block ti}  min_j ||s_bj - t_bi||^2
# and write it to its own (1,1,1,1) output block.
# ---------------------------------------------------------------------------
def _knn_loss_kernel(t_ref, s_ref, o_ref, *, tm_block, tm_sub, tn, n_chunks,
                     m_real, use_mxu):
    # t_ref: (1, tm_block, 8)  columns = [-2x, -2y, -2z, 1, 0, 0, 0, 0]
    # s_ref: (1, 8, n_pad)     rows    = [  x,   y,   z, |s|^2, 0, 0, 0, 0]
    # o_ref: (1, 1, 1, 1)      one partial sum per grid step.
    ti = pl.program_id(1)
    base = ti * tm_block
    n_sub = tm_block // tm_sub

    def sub_body(ms, total):
        m_off = pl.multiple_of(ms * tm_sub, tm_sub)
        lhs = t_ref[0, pl.ds(m_off, tm_sub), :]                    # (tm_sub, 8)

        if use_mxu:
            def src_body(j, row_min):
                off = pl.multiple_of(j * tn, tn)
                rhs = s_ref[0, :, pl.ds(off, tn)]                  # (8, tn)
                # |s|^2 - 2 t·s in one MXU matmul (f32 contract precision).
                d = jnp.dot(lhs, rhs, preferred_element_type=jnp.float32,
                            precision=lax.Precision.HIGHEST)       # (tm_sub, tn)
                return jnp.minimum(row_min, d)                     # only VPU op
        else:
            # VPU expanded form (v5e-friendly): 3 mul + 3 add + 1 min per pair.
            # Loop-invariant lane broadcasts hoisted out of the source sweep.
            t0 = jnp.broadcast_to(lhs[:, 0:1], (tm_sub, tn))       # -2x
            t1 = jnp.broadcast_to(lhs[:, 1:2], (tm_sub, tn))       # -2y
            t2c = jnp.broadcast_to(lhs[:, 2:3], (tm_sub, tn))      # -2z

            def src_body(j, row_min):
                off = pl.multiple_of(j * tn, tn)
                rhs = s_ref[0, :, pl.ds(off, tn)]                  # (8, tn)
                d = (t0 * rhs[0:1, :] + t1 * rhs[1:2, :]
                     + t2c * rhs[2:3, :] + rhs[3:4, :])            # (tm_sub, tn)
                return jnp.minimum(row_min, d)

        row_min = lax.fori_loop(
            0, n_chunks, src_body,
            jnp.full((tm_sub, tn), jnp.inf, dtype=jnp.float32),
            unroll=2)

        # One cross-lane reduction per target sub-block (not per source chunk).
        nearest = jnp.min(row_min, axis=-1, keepdims=True)         # (tm_sub, 1)
        # |t|^2 (recovered from the -2*t columns) added after the min; clamp
        # guards the small cancellation of the expanded form.
        t_sq = 0.25 * jnp.sum(jnp.square(lhs[:, 0:3]), axis=-1, keepdims=True)
        d2 = jnp.maximum(nearest + t_sq, 0.0)

        # Mask padded target rows out of the sum.
        rows = base + m_off + lax.broadcasted_iota(jnp.int32, (tm_sub, 1), 0)
        masked = jnp.where(rows < m_real, d2, 0.0)
        return total + jnp.sum(masked)

    total = lax.fori_loop(0, n_sub, sub_body, jnp.zeros((), jnp.float32))
    o_ref[...] = total.reshape(1, 1, 1, 1)


# ---------------------------------------------------------------------------
# Wrapper: NCHW -> downsampled packed point sets, pad, one pallas_call, final scale.
# ---------------------------------------------------------------------------
def knn_loss(target_pc, source_pc, *, out_h=100, out_w=100,
             tm_block=512, tm_sub=32, tn=256, use_mxu=True):
    """Pallas equivalent of knnLoss.forward. Inputs are NCHW (B, 3, H, W).

    The PyTorch module hard-codes out_H = out_W = 100; exposed here so the same
    kernel runs at small test shapes.  Tile sizes are auto-clamped to the problem.
    use_mxu=False selects the VPU expanded-form path (recommended on v5e).
    """
    bsz, c, h, w = target_pc.shape
    assert c == 3
    stride_h = stride_w = 4
    assert h >= out_h * stride_h and w >= out_w * stride_w
    assert tm_sub % 8 == 0

    # Strided downsample straight from NCHW (no full-resolution permute).
    t_small = target_pc[:, :, 0:out_h * stride_h:stride_h, 0:out_w * stride_w:stride_w]
    s_small = source_pc[:, :, 0:out_h * stride_h:stride_h, 0:out_w * stride_w:stride_w]

    # target: points on sublanes (B, M, 3); source: lane-dense planar (B, 3, N).
    t_pts = jnp.transpose(t_small, (0, 2, 3, 1)).reshape(bsz, -1, 3).astype(jnp.float32)
    s_planar = s_small.reshape(bsz, 3, -1).astype(jnp.float32)
    m = t_pts.shape[1]
    n = s_planar.shape[2]

    # Clamp tile sizes to the problem / hardware alignment.
    tn = _round_up(max(128, min(tn, _round_up(n, 128))), 128)
    tm_block = _round_up(max(tm_sub, min(tm_block, _round_up(m, tm_sub))), tm_sub)

    n_pad = _round_up(n, tn)
    m_pad = _round_up(m, tm_block)

    # ---- packed source: (B, 8, N_pad) rows = [x; y; z; |s|^2; 0; 0; 0; 0] ----
    s_sq = jnp.sum(s_planar * s_planar, axis=1, keepdims=True)           # (B, 1, N)
    if n_pad != n:
        s_planar = jnp.pad(s_planar, ((0, 0), (0, 0), (0, n_pad - n)))
        # Padded columns get a huge |s|^2 so they can never become the nearest.
        s_sq = jnp.pad(s_sq, ((0, 0), (0, 0), (0, n_pad - n)), constant_values=_BIG)
    s_packed = jnp.concatenate(
        [s_planar, s_sq, jnp.zeros((bsz, 4, n_pad), jnp.float32)], axis=1)

    # ---- packed target: (B, M_pad, 8) cols = [-2x, -2y, -2z, 1, 0, 0, 0, 0] ----
    t_packed = jnp.concatenate(
        [-2.0 * t_pts,
         jnp.ones((bsz, m, 1), jnp.float32),
         jnp.zeros((bsz, m, 4), jnp.float32)], axis=-1)
    if m_pad != m:
        # Padded target rows are masked out of the sum inside the kernel.
        t_packed = jnp.pad(t_packed, ((0, 0), (0, m_pad - m), (0, 0)))

    n_ti = m_pad // tm_block
    n_chunks = n_pad // tn

    kernel = functools.partial(
        _knn_loss_kernel, tm_block=tm_block, tm_sub=tm_sub, tn=tn,
        n_chunks=n_chunks, m_real=m, use_mxu=use_mxu)

    partial_sums = pl.pallas_call(
        kernel,
        out_shape=jax.ShapeDtypeStruct((bsz, n_ti, 1, 1), jnp.float32),
        grid=(bsz, n_ti),
        in_specs=[
            pl.BlockSpec((1, tm_block, 8), lambda b, ti: (b, ti, 0)),   # target block
            pl.BlockSpec((1, 8, n_pad), lambda b, ti: (b, 0, 0)),       # resident source
        ],
        # One private output block per grid step -> both axes can be core-sharded
        # on v7x without any shared/resident accumulator.
        out_specs=pl.BlockSpec((1, 1, 1, 1), lambda b, ti: (b, ti, 0, 0)),
        compiler_params=pltpu.CompilerParams(
            dimension_semantics=("parallel", "parallel"),
        ),
    )(t_packed, s_packed)

    # mean over batch of MSE(nearest_source, target) == sum(min d2) / (B * M * 3)
    return jnp.sum(partial_sums) / (bsz * m * 3)


# ---------------------------------------------------------------------------
# Pure-JAX reference (mirrors the PyTorch forward exactly, via the same identity).
# ---------------------------------------------------------------------------
def _downsample_points(pc_nchw, out_h, out_w):
    pc = pc_nchw[:, :, 0:out_h * 4:4, 0:out_w * 4:4]
    return jnp.transpose(pc, (0, 2, 3, 1)).reshape(pc.shape[0], -1, 3)


def knn_loss_ref(target_pc, source_pc, *, out_h, out_w):
    t = _downsample_points(target_pc, out_h, out_w).astype(jnp.float32)  # (B, M, 3)
    s = _downsample_points(source_pc, out_h, out_w).astype(jnp.float32)  # (B, N, 3)
    d2 = jnp.sum((t[:, :, None, :] - s[:, None, :, :]) ** 2, axis=-1)    # (B, M, N)
    per_batch_mse = jnp.min(d2, axis=-1).mean(axis=-1) / 3.0
    return jnp.mean(per_batch_mse)


if __name__ == "__main__":
    key = jax.random.PRNGKey(0)
    k1, k2 = jax.random.split(key)

    # Small test shapes consistent with the module's NCHW point-cloud-image inputs.
    # out_h = out_w = 15 -> M = N = 225 (not a multiple of 128): exercises both the
    # source sentinel padding and the target-row masking paths.
    B, C, H, W = 2, 3, 64, 64
    out_h = out_w = 15
    target_pc = jax.random.normal(k1, (B, C, H, W), dtype=jnp.float32)
    source_pc = jax.random.normal(k2, (B, C, H, W), dtype=jnp.float32)

    ref = knn_loss_ref(target_pc, source_pc, out_h=out_h, out_w=out_w)

    # MXU path, small tiles: multiple source chunks and target blocks per batch.
    loss_mxu_small = knn_loss(target_pc, source_pc, out_h=out_h, out_w=out_w,
                              tm_block=64, tm_sub=16, tn=128, use_mxu=True)
    loss_mxu_small = jax.block_until_ready(loss_mxu_small)

    # MXU path, default (auto-clamped) tiles: single resident block per batch.
    loss_mxu = knn_loss(target_pc, source_pc, out_h=out_h, out_w=out_w, use_mxu=True)
    loss_mxu = jax.block_until_ready(loss_mxu)

    # VPU expanded-form fallback path (v5e-friendly).
    loss_vpu = knn_loss(target_pc, source_pc, out_h=out_h, out_w=out_w, use_mxu=False)
    loss_vpu = jax.block_until_ready(loss_vpu)

    for name, val in [("mxu_small", loss_mxu_small),
                      ("mxu_default", loss_mxu),
                      ("vpu_fallback", loss_vpu)]:
        assert jnp.isfinite(val), name
        assert jnp.allclose(val, ref, rtol=5e-4, atol=1e-6), (name, val, ref)

    print("KERNEL_OK")
</pallas_src>

<mosaic_0001>
module attributes {stable_mosaic.version = 11 : i64} {
  func.func @_knn_loss_kernel(%arg0: i32, %arg1: i32, %arg2: memref<1x64x8xf32, #tpu.memory_space<vmem>>, %arg3: memref<1x8x256xf32, #tpu.memory_space<vmem>>, %arg4: memref<1x1x1x1xf32, #tpu.memory_space<vmem>>) attributes {dimension_semantics = [#tpu.dimension_semantics<parallel>, #tpu.dimension_semantics<parallel>], iteration_bounds = array<i64: 2, 4>, scalar_prefetch = 0 : i64, scratch_operands = 0 : i64, tpu.core_type = #tpu.core_type<tc>, window_params = [{transform_indices = @transform_0, window_bounds = array<i64: 1, 64, 8>}, {transform_indices = @transform_1, window_bounds = array<i64: 1, 8, 256>}, {transform_indices = @transform_2, window_bounds = array<i64: 1, 1, 1, 1>}]} {
    %c64_i32 = arith.constant 64 : i32
    %0 = arith.muli %arg1, %c64_i32 : i32
    %cst = arith.constant 0.000000e+00 : f32
    %c0_i32 = arith.constant 0 : i32
    %c4_i32 = arith.constant 4 : i32
    %1 = arith.addi %c0_i32, %c4_i32 : i32
    %c1_i32 = arith.constant 1 : i32
    %2 = scf.for %arg5 = %c0_i32 to %1 step %c1_i32 iter_args(%arg6 = %cst) -> (f32)  : i32 {
      %c16_i32 = arith.constant 16 : i32
      %5 = arith.muli %arg5, %c16_i32 : i32
      %6 = tpu.assume_multiple %5, 16 : i32
      %c0_4 = arith.constant 0 : index
      %7 = arith.index_cast %6 : i32 to index
      %c0_5 = arith.constant 0 : index
      %8 = vector.load %arg2[%c0_4, %7, %c0_5] : memref<1x64x8xf32, #tpu.memory_space<vmem>>, vector<1x16x8xf32>
      %9 = vector.shape_cast %8 : vector<1x16x8xf32> to vector<16x8xf32>
      %cst_6 = arith.constant 0x7F800000 : f32
      %10 = vector.broadcast %cst_6 : f32 to vector<16x128xf32>
      %c0_i32_7 = arith.constant 0 : i32
      %c128_i32 = arith.constant 128 : i32
      %11 = arith.muli %c0_i32_7, %c128_i32 : i32
      %12 = tpu.assume_multiple %11, 128 : i32
      %c0_8 = arith.constant 0 : index
      %c0_9 = arith.constant 0 : index
      %13 = arith.index_cast %12 : i32 to index
      %14 = vector.load %arg3[%c0_8, %c0_9, %13] : memref<1x8x256xf32, #tpu.memory_space<vmem>>, vector<1x8x128xf32>
      %15 = vector.shape_cast %14 : vector<1x8x128xf32> to vector<8x128xf32>
      %cst_10 = arith.constant dense<0.000000e+00> : vector<16x128xf32>
      %16 = tpu.matmul %9, %15, %cst_10 {dimension_numbers = #tpu.dot_dimension_numbers<[1], [0], [0], [1], [0, 0, 1, 1], [], []>, precision = #tpu.contract_precision<fp32>} : vector<16x8xf32>, vector<8x128xf32>, vector<16x128xf32> -> vector<16x128xf32>
      %17 = arith.minimumf %10, %16 : vector<16x128xf32>
      %c1_i32_11 = arith.constant 1 : i32
      %c128_i32_12 = arith.constant 128 : i32
      %18 = arith.muli %c1_i32_11, %c128_i32_12 : i32
      %19 = tpu.assume_multiple %18, 128 : i32
      %c0_13 = arith.constant 0 : index
      %c0_14 = arith.constant 0 : index
      %20 = arith.index_cast %19 : i32 to index
      %21 = vector.load %arg3[%c0_13, %c0_14, %20] : memref<1x8x256xf32, #tpu.memory_space<vmem>>, vector<1x8x128xf32>
      %22 = vector.shape_cast %21 : vector<1x8x128xf32> to vector<8x128xf32>
      %cst_15 = arith.constant dense<0.000000e+00> : vector<16x128xf32>
      %23 = tpu.matmul %9, %22, %cst_15 {dimension_numbers = #tpu.dot_dimension_numbers<[1], [0], [0], [1], [0, 0, 1, 1], [], []>, precision = #tpu.contract_precision<fp32>} : vector<16x8xf32>, vector<8x128xf32>, vector<16x128xf32> -> vector<16x128xf32>
      %24 = arith.minimumf %17, %23 : vector<16x128xf32>
      %c2_i32 = arith.constant 2 : i32
      %cst_16 = arith.constant dense<0x7F800000> : vector<16xf32>
      %25 = vector.multi_reduction <minimumf>, %24, %cst_16 [1] : vector<16x128xf32> to vector<16xf32>
      %26 = vector.shape_cast %25 : vector<16xf32> to vector<16x1xf32>
      %27 = vector.extract_strided_slice %9 {offsets = [0, 0], sizes = [16, 3], strides = [1, 1]} : vector<16x8xf32> to vector<16x3xf32>
      %28 = arith.mulf %27, %27 : vector<16x3xf32>
      %cst_17 = arith.constant dense<0.000000e+00> : vector<16xf32>
      %29 = vector.multi_reduction <add>, %28, %cst_17 [1] : vector<16x3xf32> to vector<16xf32>
      %30 = vector.shape_cast %29 : vector<16xf32> to vector<16x1xf32>
      %cst_18 = arith.constant 2.500000e-01 : f32
      %31 = vector.broadcast %cst_18 : f32 to vector<16x1xf32>
      %32 = arith.mulf %31, %30 : vector<16x1xf32>
      %33 = arith.addf %26, %32 : vector<16x1xf32>
      %cst_19 = arith.constant 0.000000e+00 : f32
      %34 = vector.broadcast %cst_19 : f32 to vector<16x1xf32>
      %35 = arith.maximumf %33, %34 : vector<16x1xf32>
      %36 = arith.addi %0, %6 : i32
      %37 = tpu.iota {dimensions = array<i32: 0>} : vector<16x1xi32>
      %38 = vector.broadcast %36 : i32 to vector<16x1xi32>
      %39 = arith.addi %38, %37 : vector<16x1xi32>
      %c225_i32 = arith.constant 225 : i32
      %40 = vector.broadcast %c225_i32 : i32 to vector<16x1xi32>
      %41 = arith.cmpi slt, %39, %40 : vector<16x1xi32>
      %cst_20 = arith.constant 0.000000e+00 : f32
      %42 = vector.broadcast %cst_20 : f32 to vector<16x1xf32>
      %43 = arith.select %41, %35, %42 : vector<16x1xi1>, vector<16x1xf32>
      %44 = vector.shape_cast %43 : vector<16x1xf32> to vector<1x16x1xf32>
      %cst_21 = arith.constant dense<0.000000e+00> : vector<1xf32>
      %45 = vector.multi_reduction <add>, %44, %cst_21 [1, 2] : vector<1x16x1xf32> to vector<1xf32>
      %46 = vector.shape_cast %45 : vector<1xf32> to vector<1x1x1xf32>
      %47 = vector.extract %46[0, 0, 0] : f32 from vector<1x1x1xf32>
      %48 = arith.addf %arg6, %47 : f32
      scf.yield %48 : f32
    }
    %c4_i32_0 = arith.constant 4 : i32
    %3 = vector.broadcast %2 : f32 to vector<1x1x1x1xf32>
    %c0 = arith.constant 0 : index
    %c0_1 = arith.constant 0 : index
    %c0_2 = arith.constant 0 : index
    %c0_3 = arith.constant 0 : index
    %4 = vector.load %arg4[%c0, %c0_1, %c0_2, %c0_3] : memref<1x1x1x1xf32, #tpu.memory_space<vmem>>, vector<1x1x1x1xf32>
    tpu.vector_store %arg4[%c0, %c0_1, %c0_2, %c0_3], %3 {strides = array<i32>} : memref<1x1x1x1xf32, #tpu.memory_space<vmem>>, vector<1x1x1x1xf32>,
    return
  }
  func.func @transform_0(%arg0: i32, %arg1: i32) -> (i32, i32, i32) {
    %c0_i32 = arith.constant 0 : i32
    %c0_i32_0 = arith.constant 0 : i32
    return %arg0, %arg1, %c0_i32 : i32, i32, i32
  }
  func.func @transform_1(%arg0: i32, %arg1: i32) -> (i32, i32, i32) {
    %c0_i32 = arith.constant 0 : i32
    %c0_i32_0 = arith.constant 0 : i32
    %c0_i32_1 = arith.constant 0 : i32
    return %arg0, %c0_i32, %c0_i32_0 : i32, i32, i32
  }
  func.func @transform_2(%arg0: i32, %arg1: i32) -> (i32, i32, i32, i32) {
    %c0_i32 = arith.constant 0 : i32
    %c0_i32_0 = arith.constant 0 : i32
    %c0_i32_1 = arith.constant 0 : i32
    return %arg0, %arg1, %c0_i32, %c0_i32_0 : i32, i32, i32, i32
  }
}

</mosaic_0001>

<llo_original>
// kernel: tpu_custom_call.1
$region0: #{tpu_custom_call.1}
  #allocation0 [shape = 'u32[]', space=smem, size = 0x4, offset = 0x4, fixed_abs, tag = 'smem constant byte address 0x4 - core index']
  #allocation1 [shape = 'u32[144,128]{1,0:T(1,128)}', space=vmem, size = 0x12000, scoped, tag = 'internal scratch']
  %s0 = inlined_call_operand.vmem [shape: f32[2,256,8], index: 0, kind: input, shape index: {}]
  %s1 = inlined_call_operand.vmem [shape: f32[2,8,256], index: 1, kind: input, shape index: {}]
  %s2 = inlined_call_operand.vmem [shape: f32[2,4,1,1], index: 2, kind: output, shape index: {}]
  %s3 = sld [smem:[#allocation0]]
  $region48: #{tpu_custom_call.1} parent=0
    _
  %s5 = ssub.s32 1, %s3
  %s6 = scalar_select 0, %s5, %s3
  loop: start=0, step=1, limit=10
  $region2: #{tpu_custom_call.1} parent=0 // loop_pre_header
    _
  $region3: #{tpu_custom_call.1} parent=0 // loop_header
    %s8 = sphi 0, %s12
    %p9 = scmp.ge.s32.totalorder %s8, 10
    %s15 = sphi 0, %s27
    %s16 = sphi 0, %s23
    %s17 = sphi 0, %s15
    %s18 = sphi 0, %s16
    %s19 = sphi 0, %s17
    %s20 = sphi 0, %s18
    %s32 = sphi 0, %s34
    %s35 = sphi 0, %s32
    %s36 = sphi 0, %s35
    %s52 = sphi 0, %s36
    %s58 = sphi 0, %s60
    %s61 = sphi 0, %s58
    %s62 = sphi 0, %s61
    %s78 = sphi 0, %s62
    %s86 = sphi 0, %s88
    %s89 = sphi 0, %s86
    %s90 = sphi 0, %s89
    %s106 = sphi 0, %s90
  $region4: #{tpu_custom_call.1} parent=0 // loop_header_branch
    %11 = sbr.rel (%p9) target = $region8
  $region5: #{tpu_custom_call.1} parent=0 // loop_body
    %s13 = ssub.s32 %s8, 1
    %s14 = ssub.s32 %s8, 2
    %s21 = sadd.s32 1, %s16
    %p22 = scmp.ge.s32.totalorder %s21, 4
    %s23 = scalar_select %p22, 0, %s21
    %s24 = sadd.s32 1, %s15
    %s25 = scalar_select %p22, %s24, %s15
    %p26 = scmp.ge.s32.totalorder %s25, 2
    %s27 = scalar_select %p26, 0, %s25
    %s28 = ssub.s32 %s15, %s27
    %s29 = ssub.s32 %s16, %s23
    %s30 = sor.u32 %s28, %s29
    %p31 = scmp.eq.s32.totalorder %s30, 0
    %s33 = sadd.s32 %s32, 1
    %s34 = scalar_select %p31, %s32, %s33
    %p37 = pneg %p31
    %p38 = scmp.eq.s32.totalorder %s8, 7
    %p39 = por %p37, %p38
    %p40 = scmp.ne.s32.totalorder %s32, %s35
    %p41 = scmp.eq.s32.totalorder %s8, 0
    %p42 = por %p40, %p41
    %p43 = scmp.ne.s32.totalorder %s32, %s35
    %p44 = scmp.eq.s32.totalorder %s13, 7
    %p45 = por %p43, %p44
    %p46 = scmp.ne.s32.totalorder %s35, %s36
    %p47 = scmp.eq.s32.totalorder %s13, 0
    %p48 = por %p46, %p47
    %p49 = scmp.ne.s32.totalorder %s35, %s36
    %p50 = scmp.eq.s32.totalorder %s14, 7
    %p51 = por %p49, %p50
    %p53 = scmp.ne.s32.totalorder %s36, %s52
    %p54 = scmp.eq.s32.totalorder %s14, 0
    %p55 = por %p53, %p54
    %s56 = ssub.s32 %s15, %s27
    %p57 = scmp.eq.s32.totalorder %s56, 0
    %s59 = sadd.s32 %s58, 1
    %s60 = scalar_select %p57, %s58, %s59
    %p63 = pneg %p57
    %p64 = scmp.eq.s32.totalorder %s8, 7
    %p65 = por %p63, %p64
    %p66 = scmp.ne.s32.totalorder %s58, %s61
    %p67 = scmp.eq.s32.totalorder %s8, 0
    %p68 = por %p66, %p67
    %p69 = scmp.ne.s32.totalorder %s58, %s61
    %p70 = scmp.eq.s32.totalorder %s13, 7
    %p71 = por %p69, %p70
    %p72 = scmp.ne.s32.totalorder %s61, %s62
    %p73 = scmp.eq.s32.totalorder %s13, 0
    %p74 = por %p72, %p73
    %p75 = scmp.ne.s32.totalorder %s61, %s62
    %p76 = scmp.eq.s32.totalorder %s14, 7
    %p77 = por %p75, %p76
    %p79 = scmp.ne.s32.totalorder %s62, %s78
    %p80 = scmp.eq.s32.totalorder %s14, 0
    %p81 = por %p79, %p80
    %s82 = ssub.s32 %s15, %s27
    %s83 = ssub.s32 %s16, %s23
    %s84 = sor.u32 %s82, %s83
    %p85 = scmp.eq.s32.totalorder %s84, 0
    %s87 = sadd.s32 %s86, 1
    %s88 = scalar_select %p85, %s86, %s87
    %p91 = pneg %p85
    %p92 = scmp.eq.s32.totalorder %s8, 7
    %p93 = por %p91, %p92
    %p94 = scmp.ne.s32.totalorder %s86, %s89
    %p95 = scmp.eq.s32.totalorder %s8, 0
    %p96 = por %p94, %p95
    %p97 = scmp.ne.s32.totalorder %s86, %s89
    %p98 = scmp.eq.s32.totalorder %s13, 7
    %p99 = por %p97, %p98
    %p100 = scmp.ne.s32.totalorder %s89, %s90
    %p101 = scmp.eq.s32.totalorder %s13, 0
    %p102 = por %p100, %p101
    %p103 = scmp.ne.s32.totalorder %s89, %s90
    %p104 = scmp.eq.s32.totalorder %s14, 7
    %p105 = por %p103, %p104
    %p107 = scmp.ne.s32.totalorder %s90, %s106
    %p108 = scmp.eq.s32.totalorder %s14, 0
    %p109 = por %p107, %p108
    %p110 = scmp.le.s32.totalorder 1, %s8
    %p111 = scmp.lt.s32.totalorder %s8, 9
    %p112 = pnand %p110, %p111
    %p113 = pneg %p112
    // Predicated region
    $region9: #{tpu_custom_call.1} parent=5 // pred_check
      _
    $region10: #{tpu_custom_call.1} parent=5 // pred_check_branch
      %115 = sbr.rel (%p112) target = $region12
    $region11: #{tpu_custom_call.1} parent=5 // pred_region
      %s116 = ssub.s32 %s8, 1
    $region12: #{tpu_custom_call.1} parent=5 // pred_fallthru
      _
    %p117 = scmp.lt.s32.totalorder %s8, 8
    // Predicated region
    $region13: #{tpu_custom_call.1} parent=5 // pred_check
      %p118 = pneg %p117
    $region14: #{tpu_custom_call.1} parent=5 // pred_check_branch
      %120 = sbr.rel (%p118) target = $region16
    $region15: #{tpu_custom_call.1} parent=5 // pred_region
      // Predicated region
      $region17: #{tpu_custom_call.1} parent=15 // pred_check
        %p121 = pneg %p42
      $region18: #{tpu_custom_call.1} parent=15 // pred_check_branch
        %123 = sbr.rel (%p121) target = $region20
      $region19: #{tpu_custom_call.1} parent=15 // pred_region
        %s124 = smul.u32 8, %s16
        %p125 = scmp.lt.s32.totalorder %s15, 1
        %s126 = scalar_select %p125, %s15, 1
        %p127 = scmp.lt.s32.totalorder %s124, 31
        %s128 = scalar_select %p127, %s124, 31
        %s129 = smul.addr %s126, 32
        %s130 = sadd.s32 %s128, %s129
        %s131 = smul.addr %s130, 8
        %s132 = scalar_lea.vmem %s0, %s131
        %s133 = smul.u32 8, %s16
      $region20: #{tpu_custom_call.1} parent=15 // pred_fallthru
        _
      // Predicated region
      $region21: #{tpu_custom_call.1} parent=15 // pred_check
        %p134 = pneg %p68
      $region22: #{tpu_custom_call.1} parent=15 // pred_check_branch
        %136 = sbr.rel (%p134) target = $region24
      $region23: #{tpu_custom_call.1} parent=15 // pred_region
        %p137 = scmp.lt.s32.totalorder %s15, 1
        %s138 = scalar_select %p137, %s15, 1
        %s139 = smul.addr %s138, 2
        %s140 = smul.addr %s139, 8
        %s141 = scalar_lea.vmem %s1, %s140
      $region24: #{tpu_custom_call.1} parent=15 // pred_fallthru
        _
    $region16: #{tpu_custom_call.1} parent=5 // pred_fallthru
      _
    %p142 = scmp.le.s32.totalorder 1, %s8
    %p143 = scmp.lt.s32.totalorder %s8, 9
    %p144 = pnand %p142, %p143
    %p145 = pneg %p144
    // Predicated region
    $region25: #{tpu_custom_call.1} parent=5 // pred_check
      _
    $region26: #{tpu_custom_call.1} parent=5 // pred_check_branch
      %147 = sbr.rel (%p144) target = $region28
    $region27: #{tpu_custom_call.1} parent=5 // pred_region
      %s148 = ssub.s32 %s8, 1
      %s149 = smul.u32 8, %s18
      %p150 = scmp.lt.s32.totalorder %s17, 1
      %s151 = scalar_select %p150, %s17, 1
      %p152 = scmp.lt.s32.totalorder %s149, 31
      %s153 = scalar_select %p152, %s149, 31
      %s154 = smul.addr %s151, 32
      %s155 = sadd.s32 %s153, %s154
      %s156 = smul.addr %s155, 8
      %s157 = scalar_lea.vmem %s0, %s156
      %p158 = pneg %p48
      %p159 = pneg %p45
      %p160 = scmp.lt.s32.totalorder %s17, 1
      %s161 = scalar_select %p160, %s17, 1
      %s162 = smul.addr %s161, 2
      %s163 = smul.addr %s162, 8
      %s164 = scalar_lea.vmem %s1, %s163
      %p165 = pneg %p74
      %p166 = pneg %p71
      %p167 = pneg %p102
      %p168 = pneg %p99
      %p169 = scmp.lt.s32.totalorder %s17, 1
      %s170 = scalar_select %p169, %s17, 1
      %p171 = scmp.lt.s32.totalorder %s18, 3
      %s172 = scalar_select %p171, %s18, 3
      %s173 = smul.addr %s170, 4
      %s174 = sadd.s32 %s172, %s173
      %s175 = scalar_lea.vmem %s2, %s174
      %s176 = smul.u32 8, %s18
      %p177 = scmp.lt.s32.totalorder %s17, 1
      %s178 = scalar_select %p177, %s17, 1
      %p179 = scmp.lt.s32.totalorder %s176, 31
      %s180 = scalar_select %p179, %s176, 31
      %s181 = smul.addr %s178, 32
      %s182 = sadd.s32 %s180, %s181
      %s183 = smul.addr %s182, 8
      %s184 = scalar_lea.vmem %s0, %s183
      %s185 = smul.u32 8, %s18
      %p186 = scmp.lt.s32.totalorder %s17, 1
      %s187 = scalar_select %p186, %s17, 1
      %s188 = smul.addr %s187, 2
      %s189 = smul.addr %s188, 8
      %s190 = scalar_lea.vmem %s1, %s189
      %p191 = scmp.lt.s32.totalorder %s17, 1
      %s192 = scalar_select %p191, %s17, 1
      %p193 = scmp.lt.s32.totalorder %s18, 3
      %s194 = scalar_select %p193, %s18, 3
      %s195 = smul.addr %s192, 4
      %s196 = sadd.s32 %s194, %s195
      %s197 = scalar_lea.vmem %s2, %s196
      %s198 = smul.u32 %s18, 64
      loop: start=0, step=1, limit=4
      $region29: #{tpu_custom_call.1} parent=27 // loop_pre_header
        _
      $region30: #{tpu_custom_call.1} parent=27 // loop_header
        %s200 = sphi 0, %s204
        %p201 = scmp.ge.s32.totalorder %s200, 4
        %s205 = sphi 0.0, %s1243
      $region31: #{tpu_custom_call.1} parent=27 // loop_header_branch
        %203 = sbr.rel (%p201) target = $region35
      $region32: #{tpu_custom_call.1} parent=27 // loop_body
        %s206 = smul.u32 %s200, 16
        %s207 = scalar_lea.vmem %s184, %s206
        %v208 = vld [vmem:[%s207] sm:$0xff]
        %v209 = vld [vmem:[%s207 + $0x8] sm:$0xff]
        %v210 = vld [vmem:[%s190] sm:$0xff]
        %vm211 = vcmask 64512
        %v213 = vsel %vm211, %v208, 0
        %v216 = vsel %vm211, %v209, 0
        %218 = vmatprep.subr.mxu0 0.0
        %v219 = vand.u32 %v210, 4294901760
        %220 = vmatpush1.msra.mxu0 %v219
        %221 = vmatprep.subr.mxu0 0.0
        %222 = vmatpush1.msra.mxu0 0.0
        %223 = vmatprep.subr.mxu0 0.0
        %224 = vmatpush1.msra.mxu0 0.0
        %225 = vmatprep.subr.mxu0 0.0
        %226 = vmatpush1.msra.mxu0 0.0
        %227 = vmatprep.subr.mxu0 0.0
        %228 = vmatpush1.msra.mxu0 0.0
        %229 = vmatprep.subr.mxu0 0.0
        %230 = vmatpush1.msra.mxu0 0.0
        %231 = vmatprep.subr.mxu0 0.0
        %232 = vmatpush1.msra.mxu0 0.0
        %233 = vmatprep.subr.mxu0 0.0
        %234 = vmatpush1.msra.mxu0 0.0
        %235 = vmatprep.subr.mxu0 0.0
        %236 = vmatpush1.msra.mxu0 0.0
        %237 = vmatprep.subr.mxu0 0.0
        %238 = vmatpush1.msra.mxu0 0.0
        %239 = vmatprep.subr.mxu0 0.0
        %240 = vmatpush1.msra.mxu0 0.0
        %241 = vmatprep.subr.mxu0 0.0
        %242 = vmatpush1.msra.mxu0 0.0
        %243 = vmatprep.subr.mxu0 0.0
        %244 = vmatpush1.msra.mxu0 0.0
        %245 = vmatprep.subr.mxu0 0.0
        %246 = vmatpush1.msra.mxu0 0.0
        %247 = vmatprep.subr.mxu0 0.0
        %248 = vmatpush1.msra.mxu0 0.0
        %249 = vmatprep.subr.mxu0 0.0
        %250 = vmatpush1.msra.mxu0 0.0
        %251 = vmatprep.subr.mxu0 0.0
        %252 = vmatpush1.msra.mxu0 0.0
        %253 = vmatprep.subr.mxu0 0.0
        %254 = vmatpush1.msra.mxu0 0.0
        %255 = vmatprep.subr.mxu0 0.0
        %256 = vmatpush1.msra.mxu0 0.0
        %257 = vmatprep.subr.mxu0 0.0
        %258 = vmatpush1.msra.mxu0 0.0
        %259 = vmatprep.subr.mxu0 0.0
        %260 = vmatpush1.msra.mxu0 0.0
        %261 = vmatprep.subr.mxu0 0.0
        %262 = vmatpush1.msra.mxu0 0.0
        %263 = vmatprep.subr.mxu0 0.0
        %264 = vmatpush1.msra.mxu0 0.0
        %265 = vmatprep.subr.mxu0 0.0
        %266 = vmatpush1.msra.mxu0 0.0
        %267 = vmatprep.subr.mxu0 0.0
        %268 = vmatpush1.msra.mxu0 0.0
        %269 = vmatprep.subr.mxu0 0.0
        %270 = vmatpush1.msra.mxu0 0.0
        %271 = vmatprep.subr.mxu0 0.0
        %272 = vmatpush1.msra.mxu0 0.0
        %273 = vmatprep.subr.mxu0 0.0
        %274 = vmatpush1.msra.mxu0 0.0
        %275 = vmatprep.subr.mxu0 0.0
        %276 = vmatpush1.msra.mxu0 0.0
        %277 = vmatprep.subr.mxu0 0.0
        %278 = vmatpush1.msra.mxu0 0.0
        %279 = vmatprep.subr.mxu0 0.0
        %280 = vmatpush1.msra.mxu0 0.0
        %281 = vmatprep.subr.mxu0 0.0
        %282 = vmatpush1.msra.mxu0 0.0
        %283 = vmatprep.mubr.f32.mxu0 0.0
        %v284 = vand.u32 %v213, 4294901760
        %v285 = vsub.f32 %v213, %v284
        %v286 = vand.u32 %v285, 4294901760
        %v287 = vsub.f32 %v285, %v286
        %v288 = vand.u32 %v287, 4294901760
        %289 = vmatmul.mubr.f32.gmra.mrb[0].mxu0 %v288
        %v290 = vpop.f32.mrb[0].mxu0
        %v291 = vadd.f32 0.0, %v290
        %v292 = vpop.f32.mrb[0].mxu0
        %293 = vmatprep.mubr.f32.mxu0 0.0
        %v294 = vand.u32 %v216, 4294901760
        %v295 = vsub.f32 %v216, %v294
        %v296 = vand.u32 %v295, 4294901760
        %v297 = vsub.f32 %v295, %v296
        %v298 = vand.u32 %v297, 4294901760
        %299 = vmatmul.mubr.f32.gmra.mrb[0].mxu0 %v298
        %v300 = vpop.f32.mrb[0].mxu0
        %v301 = vadd.f32 0.0, %v300
        %v302 = vpop.f32.mrb[0].mxu0
        %303 = vdwg.mxu0
        %304 = vmatprep.subr.mxu0 0.0
        %v305 = vand.u32 %v210, 4294901760
        %v306 = vsub.f32 %v210, %v305
        %v307 = vand.u32 %v306, 4294901760
        %v308 = vsub.f32 %v306, %v307
        %v309 = vand.u32 %v308, 4294901760
        %310 = vmatpush1.msra.mxu0 %v309
        %311 = vmatprep.subr.mxu0 0.0
        %312 = vmatpush1.msra.mxu0 0.0
        %313 = vmatprep.subr.mxu0 0.0
        %314 = vmatpush1.msra.mxu0 0.0
        %315 = vmatprep.subr.mxu0 0.0
        %316 = vmatpush1.msra.mxu0 0.0
        %317 = vmatprep.subr.mxu0 0.0
        %318 = vmatpush1.msra.mxu0 0.0
        %319 = vmatprep.subr.mxu0 0.0
        %320 = vmatpush1.msra.mxu0 0.0
        %321 = vmatprep.subr.mxu0 0.0
        %322 = vmatpush1.msra.mxu0 0.0
        %323 = vmatprep.subr.mxu0 0.0
        %324 = vmatpush1.msra.mxu0 0.0
        %325 = vmatprep.subr.mxu0 0.0
        %326 = vmatpush1.msra.mxu0 0.0
        %327 = vmatprep.subr.mxu0 0.0
        %328 = vmatpush1.msra.mxu0 0.0
        %329 = vmatprep.subr.mxu0 0.0
        %330 = vmatpush1.msra.mxu0 0.0
        %331 = vmatprep.subr.mxu0 0.0
        %332 = vmatpush1.msra.mxu0 0.0
        %333 = vmatprep.subr.mxu0 0.0
        %334 = vmatpush1.msra.mxu0 0.0
        %335 = vmatprep.subr.mxu0 0.0
        %336 = vmatpush1.msra.mxu0 0.0
        %337 = vmatprep.subr.mxu0 0.0
        %338 = vmatpush1.msra.mxu0 0.0
        %339 = vmatprep.subr.mxu0 0.0
        %340 = vmatpush1.msra.mxu0 0.0
        %341 = vmatprep.subr.mxu0 0.0
        %342 = vmatpush1.msra.mxu0 0.0
        %343 = vmatprep.subr.mxu0 0.0
        %344 = vmatpush1.msra.mxu0 0.0
        %345 = vmatprep.subr.mxu0 0.0
        %346 = vmatpush1.msra.mxu0 0.0
        %347 = vmatprep.subr.mxu0 0.0
        %348 = vmatpush1.msra.mxu0 0.0
        %349 = vmatprep.subr.mxu0 0.0
        %350 = vmatpush1.msra.mxu0 0.0
        %351 = vmatprep.subr.mxu0 0.0
        %352 = vmatpush1.msra.mxu0 0.0
        %353 = vmatprep.subr.mxu0 0.0
        %354 = vmatpush1.msra.mxu0 0.0
        %355 = vmatprep.subr.mxu0 0.0
        %356 = vmatpush1.msra.mxu0 0.0
        %357 = vmatprep.subr.mxu0 0.0
        %358 = vmatpush1.msra.mxu0 0.0
        %359 = vmatprep.subr.mxu0 0.0
        %360 = vmatpush1.msra.mxu0 0.0
        %361 = vmatprep.subr.mxu0 0.0
        %362 = vmatpush1.msra.mxu0 0.0
        %363 = vmatprep.subr.mxu0 0.0
        %364 = vmatpush1.msra.mxu0 0.0
        %365 = vmatprep.subr.mxu0 0.0
        %366 = vmatpush1.msra.mxu0 0.0
        %367 = vmatprep.subr.mxu0 0.0
        %368 = vmatpush1.msra.mxu0 0.0
        %369 = vmatprep.subr.mxu0 0.0
        %370 = vmatpush1.msra.mxu0 0.0
        %371 = vmatprep.subr.mxu0 0.0
        %372 = vmatpush1.msra.mxu0 0.0
        %373 = vmatprep.mubr.f32.mxu0 0.0
        %v374 = vand.u32 %v213, 4294901760
        %375 = vmatmul.mubr.f32.gmra.mrb[0].mxu0 %v374
        %v376 = vpop.f32.mrb[0].mxu0
        %v377 = vadd.f32 %v291, %v376
        %v378 = vpop.f32.mrb[0].mxu0
        %379 = vmatprep.mubr.f32.mxu0 0.0
        %v380 = vand.u32 %v216, 4294901760
        %381 = vmatmul.mubr.f32.gmra.mrb[0].mxu0 %v380
        %v382 = vpop.f32.mrb[0].mxu0
        %v383 = vadd.f32 %v301, %v382
        %v384 = vpop.f32.mrb[0].mxu0
        %385 = vdwg.mxu0
        %386 = vmatprep.subr.mxu0 0.0
        %v387 = vand.u32 %v210, 4294901760
        %v388 = vsub.f32 %v210, %v387
        %389 = vmatpush1.msra.mxu0 %v388
        %390 = vmatprep.subr.mxu0 0.0
        %391 = vmatpush1.msra.mxu0 0.0
        %392 = vmatprep.subr.mxu0 0.0
        %393 = vmatpush1.msra.mxu0 0.0
        %394 = vmatprep.subr.mxu0 0.0
        %395 = vmatpush1.msra.mxu0 0.0
        %396 = vmatprep.subr.mxu0 0.0
        %397 = vmatpush1.msra.mxu0 0.0
        %398 = vmatprep.subr.mxu0 0.0
        %399 = vmatpush1.msra.mxu0 0.0
        %400 = vmatprep.subr.mxu0 0.0
        %401 = vmatpush1.msra.mxu0 0.0
        %402 = vmatprep.subr.mxu0 0.0
        %403 = vmatpush1.msra.mxu0 0.0
        %404 = vmatprep.subr.mxu0 0.0
        %405 = vmatpush1.msra.mxu0 0.0
        %406 = vmatprep.subr.mxu0 0.0
        %407 = vmatpush1.msra.mxu0 0.0
        %408 = vmatprep.subr.mxu0 0.0
        %409 = vmatpush1.msra.mxu0 0.0
        %410 = vmatprep.subr.mxu0 0.0
        %411 = vmatpush1.msra.mxu0 0.0
        %412 = vmatprep.subr.mxu0 0.0
        %413 = vmatpush1.msra.mxu0 0.0
        %414 = vmatprep.subr.mxu0 0.0
        %415 = vmatpush1.msra.mxu0 0.0
        %416 = vmatprep.subr.mxu0 0.0
        %417 = vmatpush1.msra.mxu0 0.0
        %418 = vmatprep.subr.mxu0 0.0
        %419 = vmatpush1.msra.mxu0 0.0
        %420 = vmatprep.subr.mxu0 0.0
        %421 = vmatpush1.msra.mxu0 0.0
        %422 = vmatprep.subr.mxu0 0.0
        %423 = vmatpush1.msra.mxu0 0.0
        %424 = vmatprep.subr.mxu0 0.0
        %425 = vmatpush1.msra.mxu0 0.0
        %426 = vmatprep.subr.mxu0 0.0
        %427 = vmatpush1.msra.mxu0 0.0
        %428 = vmatprep.subr.mxu0 0.0
        %429 = vmatpush1.msra.mxu0 0.0
        %430 = vmatprep.subr.mxu0 0.0
        %431 = vmatpush1.msra.mxu0 0.0
        %432 = vmatprep.subr.mxu0 0.0
        %433 = vmatpush1.msra.mxu0 0.0
        %434 = vmatprep.subr.mxu0 0.0
        %435 = vmatpush1.msra.mxu0 0.0
        %436 = vmatprep.subr.mxu0 0.0
        %437 = vmatpush1.msra.mxu0 0.0
        %438 = vmatprep.subr.mxu0 0.0
        %439 = vmatpush1.msra.mxu0 0.0
        %440 = vmatprep.subr.mxu0 0.0
        %441 = vmatpush1.msra.mxu0 0.0
        %442 = vmatprep.subr.mxu0 0.0
        %443 = vmatpush1.msra.mxu0 0.0
        %444 = vmatprep.subr.mxu0 0.0
        %445 = vmatpush1.msra.mxu0 0.0
        %446 = vmatprep.subr.mxu0 0.0
        %447 = vmatpush1.msra.mxu0 0.0
        %448 = vmatprep.subr.mxu0 0.0
        %449 = vmatpush1.msra.mxu0 0.0
        %450 = vmatprep.subr.mxu0 0.0
        %451 = vmatpush1.msra.mxu0 0.0
        %452 = vmatprep.mubr.f32.mxu0 0.0
        %v453 = vand.u32 %v213, 4294901760
        %v454 = vsub.f32 %v213, %v453
        %455 = vmatmul.mubr.f32.gmra.mrb[0].mxu0 %v454
        %v456 = vpop.f32.mrb[0].mxu0
        %v457 = vadd.f32 %v377, %v456
        %v458 = vpop.f32.mrb[0].mxu0
        %459 = vmatprep.mubr.f32.mxu0 0.0
        %v460 = vand.u32 %v216, 4294901760
        %v461 = vsub.f32 %v216, %v460
        %462 = vmatmul.mubr.f32.gmra.mrb[0].mxu0 %v461
        %v463 = vpop.f32.mrb[0].mxu0
        %v464 = vadd.f32 %v383, %v463
        %v465 = vpop.f32.mrb[0].mxu0
        %466 = vdwg.mxu0
        %467 = vmatprep.subr.mxu0 0.0
        %v468 = vand.u32 %v210, 4294901760
        %469 = vmatpush1.msra.mxu0 %v468
        %470 = vmatprep.subr.mxu0 0.0
        %471 = vmatpush1.msra.mxu0 0.0
        %472 = vmatprep.subr.mxu0 0.0
        %473 = vmatpush1.msra.mxu0 0.0
        %474 = vmatprep.subr.mxu0 0.0
        %475 = vmatpush1.msra.mxu0 0.0
        %476 = vmatprep.subr.mxu0 0.0
        %477 = vmatpush1.msra.mxu0 0.0
        %478 = vmatprep.subr.mxu0 0.0
        %479 = vmatpush1.msra.mxu0 0.0
        %480 = vmatprep.subr.mxu0 0.0
        %481 = vmatpush1.msra.mxu0 0.0
        %482 = vmatprep.subr.mxu0 0.0
        %483 = vmatpush1.msra.mxu0 0.0
        %484 = vmatprep.subr.mxu0 0.0
        %485 = vmatpush1.msra.mxu0 0.0
        %486 = vmatprep.subr.mxu0 0.0
        %487 = vmatpush1.msra.mxu0 0.0
        %488 = vmatprep.subr.mxu0 0.0
        %489 = vmatpush1.msra.mxu0 0.0
        %490 = vmatprep.subr.mxu0 0.0
        %491 = vmatpush1.msra.mxu0 0.0
        %492 = vmatprep.subr.mxu0 0.0
        %493 = vmatpush1.msra.mxu0 0.0
        %494 = vmatprep.subr.mxu0 0.0
        %495 = vmatpush1.msra.mxu0 0.0
        %496 = vmatprep.subr.mxu0 0.0
        %497 = vmatpush1.msra.mxu0 0.0
        %498 = vmatprep.subr.mxu0 0.0
        %499 = vmatpush1.msra.mxu0 0.0
        %500 = vmatprep.subr.mxu0 0.0
        %501 = vmatpush1.msra.mxu0 0.0
        %502 = vmatprep.subr.mxu0 0.0
        %503 = vmatpush1.msra.mxu0 0.0
        %504 = vmatprep.subr.mxu0 0.0
        %505 = vmatpush1.msra.mxu0 0.0
        %506 = vmatprep.subr.mxu0 0.0
        %507 = vmatpush1.msra.mxu0 0.0
        %508 = vmatprep.subr.mxu0 0.0
        %509 = vmatpush1.msra.mxu0 0.0
        %510 = vmatprep.subr.mxu0 0.0
        %511 = vmatpush1.msra.mxu0 0.0
        %512 = vmatprep.subr.mxu0 0.0
        %513 = vmatpush1.msra.mxu0 0.0
        %514 = vmatprep.subr.mxu0 0.0
        %515 = vmatpush1.msra.mxu0 0.0
        %516 = vmatprep.subr.mxu0 0.0
        %517 = vmatpush1.msra.mxu0 0.0
        %518 = vmatprep.subr.mxu0 0.0
        %519 = vmatpush1.msra.mxu0 0.0
        %520 = vmatprep.subr.mxu0 0.0
        %521 = vmatpush1.msra.mxu0 0.0
        %522 = vmatprep.subr.mxu0 0.0
        %523 = vmatpush1.msra.mxu0 0.0
        %524 = vmatprep.subr.mxu0 0.0
        %525 = vmatpush1.msra.mxu0 0.0
        %526 = vmatprep.subr.mxu0 0.0
        %527 = vmatpush1.msra.mxu0 0.0
        %528 = vmatprep.subr.mxu0 0.0
        %529 = vmatpush1.msra.mxu0 0.0
        %530 = vmatprep.subr.mxu0 0.0
        %531 = vmatpush1.msra.mxu0 0.0
        %532 = vmatprep.mubr.f32.mxu0 0.0
        %v533 = vand.u32 %v213, 4294901760
        %v534 = vsub.f32 %v213, %v533
        %v535 = vand.u32 %v534, 4294901760
        %536 = vmatmul.mubr.f32.gmra.mrb[0].mxu0 %v535
        %v537 = vpop.f32.mrb[0].mxu0
        %v538 = vadd.f32 %v457, %v537
        %v539 = vpop.f32.mrb[0].mxu0
        %540 = vmatprep.mubr.f32.mxu0 0.0
        %v541 = vand.u32 %v216, 4294901760
        %v542 = vsub.f32 %v216, %v541
        %v543 = vand.u32 %v542, 4294901760
        %544 = vmatmul.mubr.f32.gmra.mrb[0].mxu0 %v543
        %v545 = vpop.f32.mrb[0].mxu0
        %v546 = vadd.f32 %v464, %v545
        %v547 = vpop.f32.mrb[0].mxu0
        %548 = vdwg.mxu0
        %549 = vmatprep.subr.mxu0 0.0
        %v550 = vand.u32 %v210, 4294901760
        %v551 = vsub.f32 %v210, %v550
        %v552 = vand.u32 %v551, 4294901760
        %553 = vmatpush1.msra.mxu0 %v552
        %554 = vmatprep.subr.mxu0 0.0
        %555 = vmatpush1.msra.mxu0 0.0
        %556 = vmatprep.subr.mxu0 0.0
        %557 = vmatpush1.msra.mxu0 0.0
        %558 = vmatprep.subr.mxu0 0.0
        %559 = vmatpush1.msra.mxu0 0.0
        %560 = vmatprep.subr.mxu0 0.0
        %561 = vmatpush1.msra.mxu0 0.0
        %562 = vmatprep.subr.mxu0 0.0
        %563 = vmatpush1.msra.mxu0 0.0
        %564 = vmatprep.subr.mxu0 0.0
        %565 = vmatpush1.msra.mxu0 0.0
        %566 = vmatprep.subr.mxu0 0.0
        %567 = vmatpush1.msra.mxu0 0.0
        %568 = vmatprep.subr.mxu0 0.0
        %569 = vmatpush1.msra.mxu0 0.0
        %570 = vmatprep.subr.mxu0 0.0
        %571 = vmatpush1.msra.mxu0 0.0
        %572 = vmatprep.subr.mxu0 0.0
        %573 = vmatpush1.msra.mxu0 0.0
        %574 = vmatprep.subr.mxu0 0.0
        %575 = vmatpush1.msra.mxu0 0.0
        %576 = vmatprep.subr.mxu0 0.0
        %577 = vmatpush1.msra.mxu0 0.0
        %578 = vmatprep.subr.mxu0 0.0
        %579 = vmatpush1.msra.mxu0 0.0
        %580 = vmatprep.subr.mxu0 0.0
        %581 = vmatpush1.msra.mxu0 0.0
        %582 = vmatprep.subr.mxu0 0.0
        %583 = vmatpush1.msra.mxu0 0.0
        %584 = vmatprep.subr.mxu0 0.0
        %585 = vmatpush1.msra.mxu0 0.0
        %586 = vmatprep.subr.mxu0 0.0
        %587 = vmatpush1.msra.mxu0 0.0
        %588 = vmatprep.subr.mxu0 0.0
        %589 = vmatpush1.msra.mxu0 0.0
        %590 = vmatprep.subr.mxu0 0.0
        %591 = vmatpush1.msra.mxu0 0.0
        %592 = vmatprep.subr.mxu0 0.0
        %593 = vmatpush1.msra.mxu0 0.0
        %594 = vmatprep.subr.mxu0 0.0
        %595 = vmatpush1.msra.mxu0 0.0
        %596 = vmatprep.subr.mxu0 0.0
        %597 = vmatpush1.msra.mxu0 0.0
        %598 = vmatprep.subr.mxu0 0.0
        %599 = vmatpush1.msra.mxu0 0.0
        %600 = vmatprep.subr.mxu0 0.0
        %601 = vmatpush1.msra.mxu0 0.0
        %602 = vmatprep.subr.mxu0 0.0
        %603 = vmatpush1.msra.mxu0 0.0
        %604 = vmatprep.subr.mxu0 0.0
        %605 = vmatpush1.msra.mxu0 0.0
        %606 = vmatprep.subr.mxu0 0.0
        %607 = vmatpush1.msra.mxu0 0.0
        %608 = vmatprep.subr.mxu0 0.0
        %609 = vmatpush1.msra.mxu0 0.0
        %610 = vmatprep.subr.mxu0 0.0
        %611 = vmatpush1.msra.mxu0 0.0
        %612 = vmatprep.subr.mxu0 0.0
        %613 = vmatpush1.msra.mxu0 0.0
        %614 = vmatprep.subr.mxu0 0.0
        %615 = vmatpush1.msra.mxu0 0.0
        %616 = vmatprep.mubr.f32.mxu0 0.0
        %v617 = vand.u32 %v213, 4294901760
        %618 = vmatmul.mubr.f32.gmra.mrb[0].mxu0 %v617
        %v619 = vpop.f32.mrb[0].mxu0
        %v620 = vadd.f32 %v538, %v619
        %v621 = vpop.f32.mrb[0].mxu0
        %622 = vmatprep.mubr.f32.mxu0 0.0
        %v623 = vand.u32 %v216, 4294901760
        %624 = vmatmul.mubr.f32.gmra.mrb[0].mxu0 %v623
        %v625 = vpop.f32.mrb[0].mxu0
        %v626 = vadd.f32 %v546, %v625
        %v627 = vpop.f32.mrb[0].mxu0
        %628 = vdwg.mxu0
        %629 = vmatprep.subr.mxu0 0.0
        %v630 = vand.u32 %v210, 4294901760
        %631 = vmatpush1.msra.mxu0 %v630
        %632 = vmatprep.subr.mxu0 0.0
        %633 = vmatpush1.msra.mxu0 0.0
        %634 = vmatprep.subr.mxu0 0.0
        %635 = vmatpush1.msra.mxu0 0.0
        %636 = vmatprep.subr.mxu0 0.0
        %637 = vmatpush1.msra.mxu0 0.0
        %638 = vmatprep.subr.mxu0 0.0
        %639 = vmatpush1.msra.mxu0 0.0
        %640 = vmatprep.subr.mxu0 0.0
        %641 = vmatpush1.msra.mxu0 0.0
        %642 = vmatprep.subr.mxu0 0.0
        %643 = vmatpush1.msra.mxu0 0.0
        %644 = vmatprep.subr.mxu0 0.0
        %645 = vmatpush1.msra.mxu0 0.0
        %646 = vmatprep.subr.mxu0 0.0
        %647 = vmatpush1.msra.mxu0 0.0
        %648 = vmatprep.subr.mxu0 0.0
        %649 = vmatpush1.msra.mxu0 0.0
        %650 = vmatprep.subr.mxu0 0.0
        %651 = vmatpush1.msra.mxu0 0.0
        %652 = vmatprep.subr.mxu0 0.0
        %653 = vmatpush1.msra.mxu0 0.0
        %654 = vmatprep.subr.mxu0 0.0
        %655 = vmatpush1.msra.mxu0 0.0
        %656 = vmatprep.subr.mxu0 0.0
        %657 = vmatpush1.msra.mxu0 0.0
        %658 = vmatprep.subr.mxu0 0.0
        %659 = vmatpush1.msra.mxu0 0.0
        %660 = vmatprep.subr.mxu0 0.0
        %661 = vmatpush1.msra.mxu0 0.0
        %662 = vmatprep.subr.mxu0 0.0
        %663 = vmatpush1.msra.mxu0 0.0
        %664 = vmatprep.subr.mxu0 0.0
        %665 = vmatpush1.msra.mxu0 0.0
        %666 = vmatprep.subr.mxu0 0.0
        %667 = vmatpush1.msra.mxu0 0.0
        %668 = vmatprep.subr.mxu0 0.0
        %669 = vmatpush1.msra.mxu0 0.0
        %670 = vmatprep.subr.mxu0 0.0
        %671 = vmatpush1.msra.mxu0 0.0
        %672 = vmatprep.subr.mxu0 0.0
        %673 = vmatpush1.msra.mxu0 0.0
        %674 = vmatprep.subr.mxu0 0.0
        %675 = vmatpush1.msra.mxu0 0.0
        %676 = vmatprep.subr.mxu0 0.0
        %677 = vmatpush1.msra.mxu0 0.0
        %678 = vmatprep.subr.mxu0 0.0
        %679 = vmatpush1.msra.mxu0 0.0
        %680 = vmatprep.subr.mxu0 0.0
        %681 = vmatpush1.msra.mxu0 0.0
        %682 = vmatprep.subr.mxu0 0.0
        %683 = vmatpush1.msra.mxu0 0.0
        %684 = vmatprep.subr.mxu0 0.0
        %685 = vmatpush1.msra.mxu0 0.0
        %686 = vmatprep.subr.mxu0 0.0
        %687 = vmatpush1.msra.mxu0 0.0
        %688 = vmatprep.subr.mxu0 0.0
        %689 = vmatpush1.msra.mxu0 0.0
        %690 = vmatprep.subr.mxu0 0.0
        %691 = vmatpush1.msra.mxu0 0.0
        %692 = vmatprep.subr.mxu0 0.0
        %693 = vmatpush1.msra.mxu0 0.0
        %694 = vmatprep.mubr.f32.mxu0 0.0
        %v695 = vand.u32 %v213, 4294901760
        %696 = vmatmul.mubr.f32.gmra.mrb[0].mxu0 %v695
        %v697 = vpop.f32.mrb[0].mxu0
        %v698 = vadd.f32 %v620, %v697
        %v699 = vpop.f32.mrb[0].mxu0
        %700 = vmatprep.mubr.f32.mxu0 0.0
        %v701 = vand.u32 %v216, 4294901760
        %702 = vmatmul.mubr.f32.gmra.mrb[0].mxu0 %v701
        %v703 = vpop.f32.mrb[0].mxu0
        %v704 = vadd.f32 %v626, %v703
        %v705 = vpop.f32.mrb[0].mxu0
        %706 = vdwg.mxu0
        %s707 = scalar_lea.vmem %s190, 8
        %v708 = vld [vmem:[%s707] sm:$0xff]
        %709 = vmatprep.subr.mxu0 0.0
        %v710 = vand.u32 %v708, 4294901760
        %711 = vmatpush1.msra.mxu0 %v710
        %712 = vmatprep.subr.mxu0 0.0
        %713 = vmatpush1.msra.mxu0 0.0
        %714 = vmatprep.subr.mxu0 0.0
        %715 = vmatpush1.msra.mxu0 0.0
        %716 = vmatprep.subr.mxu0 0.0
        %717 = vmatpush1.msra.mxu0 0.0
        %718 = vmatprep.subr.mxu0 0.0
        %719 = vmatpush1.msra.mxu0 0.0
        %720 = vmatprep.subr.mxu0 0.0
        %721 = vmatpush1.msra.mxu0 0.0
        %722 = vmatprep.subr.mxu0 0.0
        %723 = vmatpush1.msra.mxu0 0.0
        %724 = vmatprep.subr.mxu0 0.0
        %725 = vmatpush1.msra.mxu0 0.0
        %726 = vmatprep.subr.mxu0 0.0
        %727 = vmatpush1.msra.mxu0 0.0
        %728 = vmatprep.subr.mxu0 0.0
        %729 = vmatpush1.msra.mxu0 0.0
        %730 = vmatprep.subr.mxu0 0.0
        %731 = vmatpush1.msra.mxu0 0.0
        %732 = vmatprep.subr.mxu0 0.0
        %733 = vmatpush1.msra.mxu0 0.0
        %734 = vmatprep.subr.mxu0 0.0
        %735 = vmatpush1.msra.mxu0 0.0
        %736 = vmatprep.subr.mxu0 0.0
        %737 = vmatpush1.msra.mxu0 0.0
        %738 = vmatprep.subr.mxu0 0.0
        %739 = vmatpush1.msra.mxu0 0.0
        %740 = vmatprep.subr.mxu0 0.0
        %741 = vmatpush1.msra.mxu0 0.0
        %742 = vmatprep.subr.mxu0 0.0
        %743 = vmatpush1.msra.mxu0 0.0
        %744 = vmatprep.subr.mxu0 0.0
        %745 = vmatpush1.msra.mxu0 0.0
        %746 = vmatprep.subr.mxu0 0.0
        %747 = vmatpush1.msra.mxu0 0.0
        %748 = vmatprep.subr.mxu0 0.0
        %749 = vmatpush1.msra.mxu0 0.0
        %750 = vmatprep.subr.mxu0 0.0
        %751 = vmatpush1.msra.mxu0 0.0
        %752 = vmatprep.subr.mxu0 0.0
        %753 = vmatpush1.msra.mxu0 0.0
        %754 = vmatprep.subr.mxu0 0.0
        %755 = vmatpush1.msra.mxu0 0.0
        %756 = vmatprep.subr.mxu0 0.0
        %757 = vmatpush1.msra.mxu0 0.0
        %758 = vmatprep.subr.mxu0 0.0
        %759 = vmatpush1.msra.mxu0 0.0
        %760 = vmatprep.subr.mxu0 0.0
        %761 = vmatpush1.msra.mxu0 0.0
        %762 = vmatprep.subr.mxu0 0.0
        %763 = vmatpush1.msra.mxu0 0.0
        %764 = vmatprep.subr.mxu0 0.0
        %765 = vmatpush1.msra.mxu0 0.0
        %766 = vmatprep.subr.mxu0 0.0
        %767 = vmatpush1.msra.mxu0 0.0
        %768 = vmatprep.subr.mxu0 0.0
        %769 = vmatpush1.msra.mxu0 0.0
        %770 = vmatprep.subr.mxu0 0.0
        %771 = vmatpush1.msra.mxu0 0.0
        %772 = vmatprep.subr.mxu0 0.0
        %773 = vmatpush1.msra.mxu0 0.0
        %774 = vmatprep.mubr.f32.mxu0 0.0
        %v775 = vand.u32 %v213, 4294901760
        %v776 = vsub.f32 %v213, %v775
        %v777 = vand.u32 %v776, 4294901760
        %v778 = vsub.f32 %v776, %v777
        %v779 = vand.u32 %v778, 4294901760
        %780 = vmatmul.mubr.f32.gmra.mrb[0].mxu0 %v779
        %v781 = vpop.f32.mrb[0].mxu0
        %v782 = vadd.f32 0.0, %v781
        %v783 = vpop.f32.mrb[0].mxu0
        %784 = vmatprep.mubr.f32.mxu0 0.0
        %v785 = vand.u32 %v216, 4294901760
        %v786 = vsub.f32 %v216, %v785
        %v787 = vand.u32 %v786, 4294901760
        %v788 = vsub.f32 %v786, %v787
        %v789 = vand.u32 %v788, 4294901760
        %790 = vmatmul.mubr.f32.gmra.mrb[0].mxu0 %v789
        %v791 = vpop.f32.mrb[0].mxu0
        %v792 = vadd.f32 0.0, %v791
        %v793 = vpop.f32.mrb[0].mxu0
        %794 = vdwg.mxu0
        %795 = vmatprep.subr.mxu0 0.0
        %v796 = vand.u32 %v708, 4294901760
        %v797 = vsub.f32 %v708, %v796
        %v798 = vand.u32 %v797, 4294901760
        %v799 = vsub.f32 %v797, %v798
        %v800 = vand.u32 %v799, 4294901760
        %801 = vmatpush1.msra.mxu0 %v800
        %802 = vmatprep.subr.mxu0 0.0
        %803 = vmatpush1.msra.mxu0 0.0
        %804 = vmatprep.subr.mxu0 0.0
        %805 = vmatpush1.msra.mxu0 0.0
        %806 = vmatprep.subr.mxu0 0.0
        %807 = vmatpush1.msra.mxu0 0.0
        %808 = vmatprep.subr.mxu0 0.0
        %809 = vmatpush1.msra.mxu0 0.0
        %810 = vmatprep.subr.mxu0 0.0
        %811 = vmatpush1.msra.mxu0 0.0
        %812 = vmatprep.subr.mxu0 0.0
        %813 = vmatpush1.msra.mxu0 0.0
        %814 = vmatprep.subr.mxu0 0.0
        %815 = vmatpush1.msra.mxu0 0.0
        %816 = vmatprep.subr.mxu0 0.0
        %817 = vmatpush1.msra.mxu0 0.0
        %818 = vmatprep.subr.mxu0 0.0
        %819 = vmatpush1.msra.mxu0 0.0
        %820 = vmatprep.subr.mxu0 0.0
        %821 = vmatpush1.msra.mxu0 0.0
        %822 = vmatprep.subr.mxu0 0.0
        %823 = vmatpush1.msra.mxu0 0.0
        %824 = vmatprep.subr.mxu0 0.0
        %825 = vmatpush1.msra.mxu0 0.0
        %826 = vmatprep.subr.mxu0 0.0
        %827 = vmatpush1.msra.mxu0 0.0
        %828 = vmatprep.subr.mxu0 0.0
        %829 = vmatpush1.msra.mxu0 0.0
        %830 = vmatprep.subr.mxu0 0.0
        %831 = vmatpush1.msra.mxu0 0.0
        %832 = vmatprep.subr.mxu0 0.0
        %833 = vmatpush1.msra.mxu0 0.0
        %834 = vmatprep.subr.mxu0 0.0
        %835 = vmatpush1.msra.mxu0 0.0
        %836 = vmatprep.subr.mxu0 0.0
        %837 = vmatpush1.msra.mxu0 0.0
        %838 = vmatprep.subr.mxu0 0.0
        %839 = vmatpush1.msra.mxu0 0.0
        %840 = vmatprep.subr.mxu0 0.0
        %841 = vmatpush1.msra.mxu0 0.0
        %842 = vmatprep.subr.mxu0 0.0
        %843 = vmatpush1.msra.mxu0 0.0
        %844 = vmatprep.subr.mxu0 0.0
        %845 = vmatpush1.msra.mxu0 0.0
        %846 = vmatprep.subr.mxu0 0.0
        %847 = vmatpush1.msra.mxu0 0.0
        %848 = vmatprep.subr.mxu0 0.0
        %849 = vmatpush1.msra.mxu0 0.0
        %850 = vmatprep.subr.mxu0 0.0
        %851 = vmatpush1.msra.mxu0 0.0
        %852 = vmatprep.subr.mxu0 0.0
        %853 = vmatpush1.msra.mxu0 0.0
        %854 = vmatprep.subr.mxu0 0.0
        %855 = vmatpush1.msra.mxu0 0.0
        %856 = vmatprep.subr.mxu0 0.0
        %857 = vmatpush1.msra.mxu0 0.0
        %858 = vmatprep.subr.mxu0 0.0
        %859 = vmatpush1.msra.mxu0 0.0
        %860 = vmatprep.subr.mxu0 0.0
        %861 = vmatpush1.msra.mxu0 0.0
        %862 = vmatprep.subr.mxu0 0.0
        %863 = vmatpush1.msra.mxu0 0.0
        %864 = vmatprep.mubr.f32.mxu0 0.0
        %v865 = vand.u32 %v213, 4294901760
        %866 = vmatmul.mubr.f32.gmra.mrb[0].mxu0 %v865
        %v867 = vpop.f32.mrb[0].mxu0
        %v868 = vadd.f32 %v782, %v867
        %v869 = vpop.f32.mrb[0].mxu0
        %870 = vmatprep.mubr.f32.mxu0 0.0
        %v871 = vand.u32 %v216, 4294901760
        %872 = vmatmul.mubr.f32.gmra.mrb[0].mxu0 %v871
        %v873 = vpop.f32.mrb[0].mxu0
        %v874 = vadd.f32 %v792, %v873
        %v875 = vpop.f32.mrb[0].mxu0
        %876 = vdwg.mxu0
        %877 = vmatprep.subr.mxu0 0.0
        %v878 = vand.u32 %v708, 4294901760
        %v879 = vsub.f32 %v708, %v878
        %880 = vmatpush1.msra.mxu0 %v879
        %881 = vmatprep.subr.mxu0 0.0
        %882 = vmatpush1.msra.mxu0 0.0
        %883 = vmatprep.subr.mxu0 0.0
        %884 = vmatpush1.msra.mxu0 0.0
        %885 = vmatprep.subr.mxu0 0.0
        %886 = vmatpush1.msra.mxu0 0.0
        %887 = vmatprep.subr.mxu0 0.0
        %888 = vmatpush1.msra.mxu0 0.0
        %889 = vmatprep.subr.mxu0 0.0
        %890 = vmatpush1.msra.mxu0 0.0
        %891 = vmatprep.subr.mxu0 0.0
        %892 = vmatpush1.msra.mxu0 0.0
        %893 = vmatprep.subr.mxu0 0.0
        %894 = vmatpush1.msra.mxu0 0.0
        %895 = vmatprep.subr.mxu0 0.0
        %896 = vmatpush1.msra.mxu0 0.0
        %897 = vmatprep.subr.mxu0 0.0
        %898 = vmatpush1.msra.mxu0 0.0
        %899 = vmatprep.subr.mxu0 0.0
        %900 = vmatpush1.msra.mxu0 0.0
        %901 = vmatprep.subr.mxu0 0.0
        %902 = vmatpush1.msra.mxu0 0.0
        %903 = vmatprep.subr.mxu0 0.0
        %904 = vmatpush1.msra.mxu0 0.0
        %905 = vmatprep.subr.mxu0 0.0
        %906 = vmatpush1.msra.mxu0 0.0
        %907 = vmatprep.subr.mxu0 0.0
        %908 = vmatpush1.msra.mxu0 0.0
        %909 = vmatprep.subr.mxu0 0.0
        %910 = vmatpush1.msra.mxu0 0.0
        %911 = vmatprep.subr.mxu0 0.0
        %912 = vmatpush1.msra.mxu0 0.0
        %913 = vmatprep.subr.mxu0 0.0
        %914 = vmatpush1.msra.mxu0 0.0
        %915 = vmatprep.subr.mxu0 0.0
        %916 = vmatpush1.msra.mxu0 0.0
        %917 = vmatprep.subr.mxu0 0.0
        %918 = vmatpush1.msra.mxu0 0.0
        %919 = vmatprep.subr.mxu0 0.0
        %920 = vmatpush1.msra.mxu0 0.0
        %921 = vmatprep.subr.mxu0 0.0
        %922 = vmatpush1.msra.mxu0 0.0
        %923 = vmatprep.subr.mxu0 0.0
        %924 = vmatpush1.msra.mxu0 0.0
        %925 = vmatprep.subr.mxu0 0.0
        %926 = vmatpush1.msra.mxu0 0.0
        %927 = vmatprep.subr.mxu0 0.0
        %928 = vmatpush1.msra.mxu0 0.0
        %929 = vmatprep.subr.mxu0 0.0
        %930 = vmatpush1.msra.mxu0 0.0
        %931 = vmatprep.subr.mxu0 0.0
        %932 = vmatpush1.msra.mxu0 0.0
        %933 = vmatprep.subr.mxu0 0.0
        %934 = vmatpush1.msra.mxu0 0.0
        %935 = vmatprep.subr.mxu0 0.0
        %936 = vmatpush1.msra.mxu0 0.0
        %937 = vmatprep.subr.mxu0 0.0
        %938 = vmatpush1.msra.mxu0 0.0
        %939 = vmatprep.subr.mxu0 0.0
        %940 = vmatpush1.msra.mxu0 0.0
        %941 = vmatprep.subr.mxu0 0.0
        %942 = vmatpush1.msra.mxu0 0.0
        %943 = vmatprep.mubr.f32.mxu0 0.0
        %v944 = vand.u32 %v213, 4294901760
        %v945 = vsub.f32 %v213, %v944
        %946 = vmatmul.mubr.f32.gmra.mrb[0].mxu0 %v945
        %v947 = vpop.f32.mrb[0].mxu0
        %v948 = vadd.f32 %v868, %v947
        %v949 = vpop.f32.mrb[0].mxu0
        %950 = vmatprep.mubr.f32.mxu0 0.0
        %v951 = vand.u32 %v216, 4294901760
        %v952 = vsub.f32 %v216, %v951
        %953 = vmatmul.mubr.f32.gmra.mrb[0].mxu0 %v952
        %v954 = vpop.f32.mrb[0].mxu0
        %v955 = vadd.f32 %v874, %v954
        %v956 = vpop.f32.mrb[0].mxu0
        %957 = vdwg.mxu0
        %958 = vmatprep.subr.mxu0 0.0
        %v959 = vand.u32 %v708, 4294901760
        %960 = vmatpush1.msra.mxu0 %v959
        %961 = vmatprep.subr.mxu0 0.0
        %962 = vmatpush1.msra.mxu0 0.0
        %963 = vmatprep.subr.mxu0 0.0
        %964 = vmatpush1.msra.mxu0 0.0
        %965 = vmatprep.subr.mxu0 0.0
        %966 = vmatpush1.msra.mxu0 0.0
        %967 = vmatprep.subr.mxu0 0.0
        %968 = vmatpush1.msra.mxu0 0.0
        %969 = vmatprep.subr.mxu0 0.0
        %970 = vmatpush1.msra.mxu0 0.0
        %971 = vmatprep.subr.mxu0 0.0
        %972 = vmatpush1.msra.mxu0 0.0
        %973 = vmatprep.subr.mxu0 0.0
        %974 = vmatpush1.msra.mxu0 0.0
        %975 = vmatprep.subr.mxu0 0.0
        %976 = vmatpush1.msra.mxu0 0.0
        %977 = vmatprep.subr.mxu0 0.0
        %978 = vmatpush1.msra.mxu0 0.0
        %979 = vmatprep.subr.mxu0 0.0
        %980 = vmatpush1.msra.mxu0 0.0
        %981 = vmatprep.subr.mxu0 0.0
        %982 = vmatpush1.msra.mxu0 0.0
        %983 = vmatprep.subr.mxu0 0.0
        %984 = vmatpush1.msra.mxu0 0.0
        %985 = vmatprep.subr.mxu0 0.0
        %986 = vmatpush1.msra.mxu0 0.0
        %987 = vmatprep.subr.mxu0 0.0
        %988 = vmatpush1.msra.mxu0 0.0
        %989 = vmatprep.subr.mxu0 0.0
        %990 = vmatpush1.msra.mxu0 0.0
        %991 = vmatprep.subr.mxu0 0.0
        %992 = vmatpush1.msra.mxu0 0.0
        %993 = vmatprep.subr.mxu0 0.0
        %994 = vmatpush1.msra.mxu0 0.0
        %995 = vmatprep.subr.mxu0 0.0
        %996 = vmatpush1.msra.mxu0 0.0
        %997 = vmatprep.subr.mxu0 0.0
        %998 = vmatpush1.msra.mxu0 0.0
        %999 = vmatprep.subr.mxu0 0.0
        %1000 = vmatpush1.msra.mxu0 0.0
        %1001 = vmatprep.subr.mxu0 0.0
        %1002 = vmatpush1.msra.mxu0 0.0
        %1003 = vmatprep.subr.mxu0 0.0
        %1004 = vmatpush1.msra.mxu0 0.0
        %1005 = vmatprep.subr.mxu0 0.0
        %1006 = vmatpush1.msra.mxu0 0.0
        %1007 = vmatprep.subr.mxu0 0.0
        %1008 = vmatpush1.msra.mxu0 0.0
        %1009 = vmatprep.subr.mxu0 0.0
        %1010 = vmatpush1.msra.mxu0 0.0
        %1011 = vmatprep.subr.mxu0 0.0
        %1012 = vmatpush1.msra.mxu0 0.0
        %1013 = vmatprep.subr.mxu0 0.0
        %1014 = vmatpush1.msra.mxu0 0.0
        %1015 = vmatprep.subr.mxu0 0.0
        %1016 = vmatpush1.msra.mxu0 0.0
        %1017 = vmatprep.subr.mxu0 0.0
        %1018 = vmatpush1.msra.mxu0 0.0
        %1019 = vmatprep.subr.mxu0 0.0
        %1020 = vmatpush1.msra.mxu0 0.0
        %1021 = vmatprep.subr.mxu0 0.0
        %1022 = vmatpush1.msra.mxu0 0.0
        %1023 = vmatprep.mubr.f32.mxu0 0.0
        %v1024 = vand.u32 %v213, 4294901760
        %v1025 = vsub.f32 %v213, %v1024
        %v1026 = vand.u32 %v1025, 4294901760
        %1027 = vmatmul.mubr.f32.gmra.mrb[0].mxu0 %v1026
        %v1028 = vpop.f32.mrb[0].mxu0
        %v1029 = vadd.f32 %v948, %v1028
        %v1030 = vpop.f32.mrb[0].mxu0
        %1031 = vmatprep.mubr.f32.mxu0 0.0
        %v1032 = vand.u32 %v216, 4294901760
        %v1033 = vsub.f32 %v216, %v1032
        %v1034 = vand.u32 %v1033, 4294901760
        %1035 = vmatmul.mubr.f32.gmra.mrb[0].mxu0 %v1034
        %v1036 = vpop.f32.mrb[0].mxu0
        %v1037 = vadd.f32 %v955, %v1036
        %v1038 = vpop.f32.mrb[0].mxu0
        %1039 = vdwg.mxu0
        %1040 = vmatprep.subr.mxu0 0.0
        %v1041 = vand.u32 %v708, 4294901760
        %v1042 = vsub.f32 %v708, %v1041
        %v1043 = vand.u32 %v1042, 4294901760
        %1044 = vmatpush1.msra.mxu0 %v1043
        %1045 = vmatprep.subr.mxu0 0.0
        %1046 = vmatpush1.msra.mxu0 0.0
        %1047 = vmatprep.subr.mxu0 0.0
        %1048 = vmatpush1.msra.mxu0 0.0
        %1049 = vmatprep.subr.mxu0 0.0
        %1050 = vmatpush1.msra.mxu0 0.0
        %1051 = vmatprep.subr.mxu0 0.0
        %1052 = vmatpush1.msra.mxu0 0.0
        %1053 = vmatprep.subr.mxu0 0.0
        %1054 = vmatpush1.msra.mxu0 0.0
        %1055 = vmatprep.subr.mxu0 0.0
        %1056 = vmatpush1.msra.mxu0 0.0
        %1057 = vmatprep.subr.mxu0 0.0
        %1058 = vmatpush1.msra.mxu0 0.0
        %1059 = vmatprep.subr.mxu0 0.0
        %1060 = vmatpush1.msra.mxu0 0.0
        %1061 = vmatprep.subr.mxu0 0.0
        %1062 = vmatpush1.msra.mxu0 0.0
        %1063 = vmatprep.subr.mxu0 0.0
        %1064 = vmatpush1.msra.mxu0 0.0
        %1065 = vmatprep.subr.mxu0 0.0
        %1066 = vmatpush1.msra.mxu0 0.0
        %1067 = vmatprep.subr.mxu0 0.0
        %1068 = vmatpush1.msra.mxu0 0.0
        %1069 = vmatprep.subr.mxu0 0.0
        %1070 = vmatpush1.msra.mxu0 0.0
        %1071 = vmatprep.subr.mxu0 0.0
        %1072 = vmatpush1.msra.mxu0 0.0
        %1073 = vmatprep.subr.mxu0 0.0
        %1074 = vmatpush1.msra.mxu0 0.0
        %1075 = vmatprep.subr.mxu0 0.0
        %1076 = vmatpush1.msra.mxu0 0.0
        %1077 = vmatprep.subr.mxu0 0.0
        %1078 = vmatpush1.msra.mxu0 0.0
        %1079 = vmatprep.subr.mxu0 0.0
        %1080 = vmatpush1.msra.mxu0 0.0
        %1081 = vmatprep.subr.mxu0 0.0
        %1082 = vmatpush1.msra.mxu0 0.0
        %1083 = vmatprep.subr.mxu0 0.0
        %1084 = vmatpush1.msra.mxu0 0.0
        %1085 = vmatprep.subr.mxu0 0.0
        %1086 = vmatpush1.msra.mxu0 0.0
        %1087 = vmatprep.subr.mxu0 0.0
        %1088 = vmatpush1.msra.mxu0 0.0
        %1089 = vmatprep.subr.mxu0 0.0
        %1090 = vmatpush1.msra.mxu0 0.0
        %1091 = vmatprep.subr.mxu0 0.0
        %1092 = vmatpush1.msra.mxu0 0.0
        %1093 = vmatprep.subr.mxu0 0.0
        %1094 = vmatpush1.msra.mxu0 0.0
        %1095 = vmatprep.subr.mxu0 0.0
        %1096 = vmatpush1.msra.mxu0 0.0
        %1097 = vmatprep.subr.mxu0 0.0
        %1098 = vmatpush1.msra.mxu0 0.0
        %1099 = vmatprep.subr.mxu0 0.0
        %1100 = vmatpush1.msra.mxu0 0.0
        %1101 = vmatprep.subr.mxu0 0.0
        %1102 = vmatpush1.msra.mxu0 0.0
        %1103 = vmatprep.subr.mxu0 0.0
        %1104 = vmatpush1.msra.mxu0 0.0
        %1105 = vmatprep.subr.mxu0 0.0
        %1106 = vmatpush1.msra.mxu0 0.0
        %1107 = vmatprep.mubr.f32.mxu0 0.0
        %v1108 = vand.u32 %v213, 4294901760
        %1109 = vmatmul.mubr.f32.gmra.mrb[0].mxu0 %v1108
        %v1110 = vpop.f32.mrb[0].mxu0
        %v1111 = vadd.f32 %v1029, %v1110
        %v1112 = vpop.f32.mrb[0].mxu0
        %1113 = vmatprep.mubr.f32.mxu0 0.0
        %v1114 = vand.u32 %v216, 4294901760
        %1115 = vmatmul.mubr.f32.gmra.mrb[0].mxu0 %v1114
        %v1116 = vpop.f32.mrb[0].mxu0
        %v1117 = vadd.f32 %v1037, %v1116
        %v1118 = vpop.f32.mrb[0].mxu0
        %1119 = vdwg.mxu0
        %1120 = vmatprep.subr.mxu0 0.0
        %v1121 = vand.u32 %v708, 4294901760
        %1122 = vmatpush1.msra.mxu0 %v1121
        %1123 = vmatprep.subr.mxu0 0.0
        %1124 = vmatpush1.msra.mxu0 0.0
        %1125 = vmatprep.subr.mxu0 0.0
        %1126 = vmatpush1.msra.mxu0 0.0
        %1127 = vmatprep.subr.mxu0 0.0
        %1128 = vmatpush1.msra.mxu0 0.0
        %1129 = vmatprep.subr.mxu0 0.0
        %1130 = vmatpush1.msra.mxu0 0.0
        %1131 = vmatprep.subr.mxu0 0.0
        %1132 = vmatpush1.msra.mxu0 0.0
        %1133 = vmatprep.subr.mxu0 0.0
        %1134 = vmatpush1.msra.mxu0 0.0
        %1135 = vmatprep.subr.mxu0 0.0
        %1136 = vmatpush1.msra.mxu0 0.0
        %1137 = vmatprep.subr.mxu0 0.0
        %1138 = vmatpush1.msra.mxu0 0.0
        %1139 = vmatprep.subr.mxu0 0.0
        %1140 = vmatpush1.msra.mxu0 0.0
        %1141 = vmatprep.subr.mxu0 0.0
        %1142 = vmatpush1.msra.mxu0 0.0
        %1143 = vmatprep.subr.mxu0 0.0
        %1144 = vmatpush1.msra.mxu0 0.0
        %1145 = vmatprep.subr.mxu0 0.0
        %1146 = vmatpush1.msra.mxu0 0.0
        %1147 = vmatprep.subr.mxu0 0.0
        %1148 = vmatpush1.msra.mxu0 0.0
        %1149 = vmatprep.subr.mxu0 0.0
        %1150 = vmatpush1.msra.mxu0 0.0
        %1151 = vmatprep.subr.mxu0 0.0
        %1152 = vmatpush1.msra.mxu0 0.0
        %1153 = vmatprep.subr.mxu0 0.0
        %1154 = vmatpush1.msra.mxu0 0.0
        %1155 = vmatprep.subr.mxu0 0.0
        %1156 = vmatpush1.msra.mxu0 0.0
        %1157 = vmatprep.subr.mxu0 0.0
        %1158 = vmatpush1.msra.mxu0 0.0
        %1159 = vmatprep.subr.mxu0 0.0
        %1160 = vmatpush1.msra.mxu0 0.0
        %1161 = vmatprep.subr.mxu0 0.0
        %1162 = vmatpush1.msra.mxu0 0.0
        %1163 = vmatprep.subr.mxu0 0.0
        %1164 = vmatpush1.msra.mxu0 0.0
        %1165 = vmatprep.subr.mxu0 0.0
        %1166 = vmatpush1.msra.mxu0 0.0
        %1167 = vmatprep.subr.mxu0 0.0
        %1168 = vmatpush1.msra.mxu0 0.0
        %1169 = vmatprep.subr.mxu0 0.0
        %1170 = vmatpush1.msra.mxu0 0.0
        %1171 = vmatprep.subr.mxu0 0.0
        %1172 = vmatpush1.msra.mxu0 0.0
        %1173 = vmatprep.subr.mxu0 0.0
        %1174 = vmatpush1.msra.mxu0 0.0
        %1175 = vmatprep.subr.mxu0 0.0
        %1176 = vmatpush1.msra.mxu0 0.0
        %1177 = vmatprep.subr.mxu0 0.0
        %1178 = vmatpush1.msra.mxu0 0.0
        %1179 = vmatprep.subr.mxu0 0.0
        %1180 = vmatpush1.msra.mxu0 0.0
        %1181 = vmatprep.subr.mxu0 0.0
        %1182 = vmatpush1.msra.mxu0 0.0
        %1183 = vmatprep.subr.mxu0 0.0
        %1184 = vmatpush1.msra.mxu0 0.0
        %1185 = vmatprep.mubr.f32.mxu0 0.0
        %v1186 = vand.u32 %v213, 4294901760
        %1187 = vmatmul.mubr.f32.gmra.mrb[0].mxu0 %v1186
        %v1188 = vpop.f32.mrb[0].mxu0
        %v1189 = vadd.f32 %v1111, %v1188
        %v1190 = vpop.f32.mrb[0].mxu0
        %1191 = vmatprep.mubr.f32.mxu0 0.0
        %v1192 = vand.u32 %v216, 4294901760
        %1193 = vmatmul.mubr.f32.gmra.mrb[0].mxu0 %v1192
        %v1194 = vpop.f32.mrb[0].mxu0
        %v1195 = vadd.f32 %v1117, %v1194
        %v1196 = vpop.f32.mrb[0].mxu0
        %1197 = vdwg.mxu0
        %v1198 = vmin.f32 %v698, %v1189
        %v1199 = vmin.f32 %v704, %v1195
        %1200 = vmin.xlane.f32.xlu0 %v1198
        %v1201 = vpop.xlane.xlu0 %1200
        %1202 = vmin.xlane.f32.xlu0 %v1199
        %v1203 = vpop.xlane.xlu0 %1202
        %v1204 = vmul.f32 %v208, %v208
        %v1205 = vmul.f32 %v209, %v209
        %vm1206 = vcmask 23552
        %v1207 = vsel %vm1206, %v1204, 0.0
        %1208 = vadd.xlane.f32.xlu0 %v1207
        %v1209 = vpop.xlane.xlu0 %1208
        %v1210 = vsel %vm1206, %v1205, 0.0
        %1211 = vadd.xlane.f32.xlu0 %v1210
        %v1212 = vpop.xlane.xlu0 %1211
        %v1213 = vmul.f32 %v1209, 0.25
        %v1214 = vmul.f32 %v1212, 0.25
        %v1215 = vadd.f32 %v1201, %v1213
        %v1216 = vadd.f32 %v1203, %v1214
        %v1217 = vmax.f32 %v1215, 0.0
        %v1218 = vmax.f32 %v1216, 0.0
        %s1219 = sadd.s32 %s198, %s206
        %v1220 = vlaneseq
        %v1221 = vshrl.u32 %v1220, 7
        %v1222 = vadd.s32 %v1221, 8
        %v1223 = vstv %s1219
        %v1224 = vadd.s32 %v1223, %v1221
        %v1225 = vadd.s32 %v1223, %v1222
        %vm1226 = vcmp.lt.s32.totalorder %v1224, 225
        %vm1227 = vcmp.lt.s32.totalorder %v1225, 225
        %v1228 = vsel %vm1226, %v1217, 0.0
        %v1229 = vsel %vm1227, %v1218, 0.0
        %vm1230 = vcmask 7168
        %v1231 = vsel %vm1230, %v1228, 0.0
        %v1232 = vsel %vm1230, %v1229, 0.0
        %v1233 = vadd.f32 %v1231, %v1232
        %1234 = vadd.xlane.f32.xlu0 %v1233
        %v1235 = vpop.xlane.xlu0 %1234
        %v1236 = vrot.slane %v1235, 4
        %v1237 = vadd.f32 %v1235, %v1236
        %v1238 = vrot.slane %v1237, 2
        %v1239 = vadd.f32 %v1237, %v1238
        %v1240 = vrot.slane %v1239, 1
        %v1241 = vadd.f32 %v1239, %v1240
        %s1242 = vtos %v1241
        %s1243 = sadd.f32 %s205, %s1242
      $region33: #{tpu_custom_call.1} parent=27 // loop_footer
        %s204 = sadd.s32 1, %s200
      $region34: #{tpu_custom_call.1} parent=27 // loop_footer_branch
        %199 = sbr.rel target = $region30
      $region35: #{tpu_custom_call.1} parent=27 // loop_exit
        _
      %v1244 = vstv %s205
      %vm1245 = vcmask 0
      %1246 = vst.msk [vmem:[%s197] sm:$0x1] %vm1245, %v1244
      %p1247 = scmp.lt.s32.totalorder %s17, 1
      %s1248 = scalar_select %p1247, %s17, 1
      %p1249 = scmp.lt.s32.totalorder %s18, 3
      %s1250 = scalar_select %p1249, %s18, 3
      %s1251 = smul.addr %s1248, 4
      %s1252 = sadd.s32 %s1250, %s1251
      %s1253 = scalar_lea.vmem %s2, %s1252
      // Predicated region
      $region36: #{tpu_custom_call.1} parent=27 // pred_check
        %p1254 = pneg %p99
      $region37: #{tpu_custom_call.1} parent=27 // pred_check_branch
        %1256 = sbr.rel (%p1254) target = $region39
      $region38: #{tpu_custom_call.1} parent=27 // pred_region
        _
      $region39: #{tpu_custom_call.1} parent=27 // pred_fallthru
        _
    $region28: #{tpu_custom_call.1} parent=5 // pred_fallthru
      _
    %p1257 = scmp.le.s32.totalorder 2, %s8
    // Predicated region
    $region40: #{tpu_custom_call.1} parent=5 // pred_check
      %p1258 = pneg %p1257
    $region41: #{tpu_custom_call.1} parent=5 // pred_check_branch
      %1260 = sbr.rel (%p1258) target = $region43
    $region42: #{tpu_custom_call.1} parent=5 // pred_region
      %s1261 = ssub.s32 %s8, 2
      // Predicated region
      $region44: #{tpu_custom_call.1} parent=42 // pred_check
        %p1262 = pneg %p105
      $region45: #{tpu_custom_call.1} parent=42 // pred_check_branch
        %1264 = sbr.rel (%p1262) target = $region47
      $region46: #{tpu_custom_call.1} parent=42 // pred_region
        %p1265 = scmp.lt.s32.totalorder %s19, 1
        %s1266 = scalar_select %p1265, %s19, 1
        %p1267 = scmp.lt.s32.totalorder %s20, 3
        %s1268 = scalar_select %p1267, %s20, 3
        %s1269 = smul.addr %s1266, 4
        %s1270 = sadd.s32 %s1268, %s1269
        %s1271 = scalar_lea.vmem %s2, %s1270
      $region47: #{tpu_custom_call.1} parent=42 // pred_fallthru
        _
    $region43: #{tpu_custom_call.1} parent=5 // pred_fallthru
      _
  $region6: #{tpu_custom_call.1} parent=0 // loop_footer
    %s12 = sadd.s32 1, %s8
  $region7: #{tpu_custom_call.1} parent=0 // loop_footer_branch
    %7 = sbr.rel target = $region3
  $region8: #{tpu_custom_call.1} parent=0 // loop_exit
    _

</llo_original>
